<compile_context>
chip_gen: v7x
topology: tpu7x:2x2x1
jax: 0.10.0
libtpu: 0.0.40
codegen_flags: <defaults>
</compile_context>

<pallas_src>
import jax
import jax.numpy as jnp
from jax import lax
from jax.experimental import pallas as pl
from jax.experimental.pallas import tpu as pltpu


def rnn_fc_kernel(x_ref, h0_ref, wih_ref, whh_ref, b_ref, wfc_ref, bfc_ref,
                  y_ref, hn_ref):
    B, T, _ = x_ref.shape            # I == 1, batch-first input

    # Weights hoisted once. The recurrent weight is cast to bf16 once so each
    # per-step matmul is a single-pass bf16 MXU op with f32 accumulation.
    w_ih = wih_ref[...]                               # (1, H) f32
    bias = b_ref[...]                                 # (1, H) f32
    w_fc = wfc_ref[...]                               # (1, H) f32
    w_hh_bf16 = whh_ref[...].astype(jnp.bfloat16)     # (H, H) MXU operand

    # ------------------------------------------------------------------
    # (1) Input projection + bias for ALL timesteps, off the recurrent chain.
    #     I == 1  =>  x @ W_ih is a broadcast multiply (pure VPU), kept in
    #     vregs (no VMEM slab).
    # ------------------------------------------------------------------
    x_all = x_ref[...]                                # (B, T, 1)
    xb = [x_all[:, t, :] * w_ih + bias for t in range(T)]   # T x (B, H) f32

    # ------------------------------------------------------------------
    # (2) Serial recurrence, Python-unrolled (T static).  Critical path per
    #     step: bf16 cast of h -> one single-pass MXU matmul -> f32 add ->
    #     tanh (EUP).  h and all hidden states stay register-resident.
    # ------------------------------------------------------------------
    h = h0_ref[...]                                   # (B, H) f32 carry
    hs = []
    for t in range(T):
        rec = jnp.dot(h.astype(jnp.bfloat16), w_hh_bf16,
                      preferred_element_type=jnp.float32)
        h = jnp.tanh(xb[t] + rec)                     # (B, H) f32
        hs.append(h)
    hn_ref[...] = h

    # ------------------------------------------------------------------
    # (3) FC head (O == 1), hoisted out of the recurrence: VPU broadcast mul
    #     + XLU lane reduction over H on the stacked hidden states, then a
    #     single lane-dense (B, T) store.
    # ------------------------------------------------------------------
    hstack = jnp.stack(hs, axis=1)                    # (B, T, H)
    y = jnp.sum(hstack * w_fc, axis=-1) + bfc_ref[...]   # (B, T) + (1, 1)
    y_ref[...] = y.astype(y_ref.dtype)


def rnn_fc_forward(x_btI, h0_bh, w_ih, w_hh, b_comb, w_fc, b_fc):
    """x_btI: (B, T, I) batch-first like PyTorch.
    w_ih: (I, H), w_hh: (H, H), b_comb: (1, H), w_fc: (O, H), b_fc: (1, O).
    Returns (y (B, T, O), h_n (1, B, H))."""
    B, T, I = x_btI.shape
    H = w_hh.shape[0]
    O = w_fc.shape[0]
    # Kernel specializes the contractions for I == 1 / O == 1 (broadcast mul /
    # lane reduce); error loudly instead of silently computing the wrong thing.
    assert I == 1 and O == 1, "kernel specializes input_size == output_size == 1"

    full = lambda shape: pl.BlockSpec(shape, lambda i: (0,) * len(shape))

    y_bt, h_n = pl.pallas_call(
        rnn_fc_kernel,
        grid=(1,),
        in_specs=[
            full((B, T, I)),     # x, batch-first (as given -- no transpose)
            full((B, H)),        # h0
            full((I, H)),        # W_ih (== PyTorch W_ih^T), I == 1
            full((H, H)),        # W_hh (== PyTorch W_hh^T)
            full((1, H)),        # bias (b_ih + b_hh)
            full((O, H)),        # W_fc (PyTorch layout), O == 1
            full((1, O)),        # b_fc
        ],
        out_specs=[
            full((B, T)),        # y, lane-dense (T in lanes)
            full((B, H)),        # final hidden state
        ],
        out_shape=[
            jax.ShapeDtypeStruct((B, T), jnp.float32),
            jax.ShapeDtypeStruct((B, H), jnp.float32),
        ],
        compiler_params=pltpu.CompilerParams(
            dimension_semantics=("arbitrary",)),
    )(x_btI, h0_bh, w_ih, w_hh, b_comb, w_fc, b_fc)

    # Only free reshapes in the wrapper (add size-1 dims); no transposes.
    return y_bt[:, :, None], h_n[None, :, :]


def reference_forward(x_btI, h0_bh, w_ih, w_hh, b_comb, w_fc, b_fc,
                      recurrent_dtype=jnp.float32):
    """Pure-JAX reference.  recurrent_dtype=bfloat16 matches the kernel's MXU
    operand precision (f32 accumulation either way)."""
    w_hh_c = w_hh.astype(recurrent_dtype)

    def step(h, x_t):
        rec = jnp.dot(h.astype(recurrent_dtype), w_hh_c,
                      preferred_element_type=jnp.float32)
        h_new = jnp.tanh(x_t * w_ih + b_comb + rec)   # x_t (B,1) * (1,H)
        return h_new, h_new

    x_tbi = jnp.transpose(x_btI, (1, 0, 2))           # (T, B, 1)
    h_n, hs_tbh = lax.scan(step, h0_bh, x_tbi)        # hs: (T, B, H)
    y_tbo = hs_tbh @ w_fc.T + b_fc                    # (T, B, O)
    return jnp.transpose(y_tbo, (1, 0, 2)), h_n[None, :, :]


if __name__ == "__main__":
    # Small shapes consistent with the module: input_size=1, hidden=32, output=1.
    B, T, I, H, O = 2, 8, 1, 32, 1

    key = jax.random.PRNGKey(0)
    k1, k2, k3, k4, k5, k6, k7 = jax.random.split(key, 7)

    # Deterministic parameter init (uniform +-1/sqrt(H), like PyTorch RNN/Linear).
    bound = 1.0 / jnp.sqrt(jnp.float32(H))
    w_ih = jax.random.uniform(k1, (I, H), jnp.float32, -bound, bound)   # W_ih^T
    w_hh = jax.random.uniform(k2, (H, H), jnp.float32, -bound, bound)   # W_hh^T
    b_ih = jax.random.uniform(k3, (H,), jnp.float32, -bound, bound)
    b_hh = jax.random.uniform(k4, (H,), jnp.float32, -bound, bound)
    b_comb = (b_ih + b_hh)[None, :]                                     # (1, H)
    w_fc = jax.random.uniform(k5, (O, H), jnp.float32, -bound, bound)   # (O, H)
    b_fc = jax.random.uniform(k6, (O,), jnp.float32, -bound, bound)[None, :]  # (1, O)

    # Input: cosine-curve-like sequence, batch-first (B, T, 1).
    t_grid = jnp.linspace(0.0, 2.0 * jnp.pi, T, dtype=jnp.float32)
    x = jnp.broadcast_to(jnp.cos(t_grid)[None, :, None], (B, T, I)).astype(jnp.float32)
    x = x + 0.01 * jax.random.normal(k7, (B, T, I), jnp.float32)

    # h_state = None in the PyTorch driver -> zero initial hidden state.
    h0 = jnp.zeros((B, H), jnp.float32)

    y, h_n = rnn_fc_forward(x, h0, w_ih, w_hh, b_comb, w_fc, b_fc)
    jax.block_until_ready((y, h_n))
    assert y.shape == (B, T, O) and h_n.shape == (1, B, H)

    # Matched-precision reference (bf16 MXU operands, f32 accumulation/carry).
    y_m, h_m = reference_forward(x, h0, w_ih, w_hh, b_comb, w_fc, b_fc,
                                 recurrent_dtype=jnp.bfloat16)
    assert jnp.allclose(y, y_m, atol=1e-3, rtol=1e-3)
    assert jnp.allclose(h_n, h_m, atol=1e-3, rtol=1e-3)

    # Full-f32 reference (PyTorch semantics); looser tolerance covers the bf16
    # MXU-operand rounding on the recurrent chain.
    y_f, h_f = reference_forward(x, h0, w_ih, w_hh, b_comb, w_fc, b_fc)
    assert jnp.allclose(y, y_f, atol=5e-2, rtol=5e-2)
    assert jnp.allclose(h_n, h_f, atol=5e-2, rtol=5e-2)

    print("KERNEL_OK")
</pallas_src>

<mosaic_0001>
module attributes {stable_mosaic.version = 11 : i64} {
  func.func @rnn_fc_kernel(%arg0: i32, %arg1: memref<2x8x1xf32, #tpu.memory_space<vmem>>, %arg2: memref<2x32xf32, #tpu.memory_space<vmem>>, %arg3: memref<1x32xf32, #tpu.memory_space<vmem>>, %arg4: memref<32x32xf32, #tpu.memory_space<vmem>>, %arg5: memref<1x32xf32, #tpu.memory_space<vmem>>, %arg6: memref<1x32xf32, #tpu.memory_space<vmem>>, %arg7: memref<1x1xf32, #tpu.memory_space<vmem>>, %arg8: memref<2x8xf32, #tpu.memory_space<vmem>>, %arg9: memref<2x32xf32, #tpu.memory_space<vmem>>) attributes {dimension_semantics = [#tpu.dimension_semantics<arbitrary>], iteration_bounds = array<i64: 1>, scalar_prefetch = 0 : i64, scratch_operands = 0 : i64, tpu.core_type = #tpu.core_type<tc>, window_params = [{pipeline_mode = #tpu.pipeline_mode<synchronous>, transform_indices = @transform_0, window_bounds = array<i64: 2, 8, 1>}, {pipeline_mode = #tpu.pipeline_mode<synchronous>, transform_indices = @transform_1, window_bounds = array<i64: 2, 32>}, {pipeline_mode = #tpu.pipeline_mode<synchronous>, transform_indices = @transform_2, window_bounds = array<i64: 1, 32>}, {pipeline_mode = #tpu.pipeline_mode<synchronous>, transform_indices = @transform_3, window_bounds = array<i64: 32, 32>}, {pipeline_mode = #tpu.pipeline_mode<synchronous>, transform_indices = @transform_4, window_bounds = array<i64: 1, 32>}, {pipeline_mode = #tpu.pipeline_mode<synchronous>, transform_indices = @transform_5, window_bounds = array<i64: 1, 32>}, {pipeline_mode = #tpu.pipeline_mode<synchronous>, transform_indices = @transform_6, window_bounds = array<i64: 1, 1>}, {pipeline_mode = #tpu.pipeline_mode<synchronous>, transform_indices = @transform_7, window_bounds = array<i64: 2, 8>}, {pipeline_mode = #tpu.pipeline_mode<synchronous>, transform_indices = @transform_8, window_bounds = array<i64: 2, 32>}]} {
    %c0 = arith.constant 0 : index
    %c0_0 = arith.constant 0 : index
    %0 = vector.load %arg3[%c0, %c0_0] : memref<1x32xf32, #tpu.memory_space<vmem>>, vector<1x32xf32>
    %c0_1 = arith.constant 0 : index
    %c0_2 = arith.constant 0 : index
    %1 = vector.load %arg5[%c0_1, %c0_2] : memref<1x32xf32, #tpu.memory_space<vmem>>, vector<1x32xf32>
    %c0_3 = arith.constant 0 : index
    %c0_4 = arith.constant 0 : index
    %2 = vector.load %arg6[%c0_3, %c0_4] : memref<1x32xf32, #tpu.memory_space<vmem>>, vector<1x32xf32>
    %c0_5 = arith.constant 0 : index
    %c0_6 = arith.constant 0 : index
    %3 = vector.load %arg4[%c0_5, %c0_6] : memref<32x32xf32, #tpu.memory_space<vmem>>, vector<32x32xf32>
    %4 = arith.truncf %3 : vector<32x32xf32> to vector<32x32xbf16>
    %c0_7 = arith.constant 0 : index
    %c0_8 = arith.constant 0 : index
    %c0_9 = arith.constant 0 : index
    %5 = vector.load %arg1[%c0_7, %c0_8, %c0_9] : memref<2x8x1xf32, #tpu.memory_space<vmem>>, vector<2x8x1xf32>
    %6 = vector.extract_strided_slice %5 {offsets = [0, 0, 0], sizes = [2, 1, 1], strides = [1, 1, 1]} : vector<2x8x1xf32> to vector<2x1x1xf32>
    %7 = vector.shape_cast %6 : vector<2x1x1xf32> to vector<2x1xf32>
    %8 = vector.broadcast %7 : vector<2x1xf32> to vector<2x32xf32>
    %9 = vector.broadcast %0 : vector<1x32xf32> to vector<2x32xf32>
    %10 = arith.mulf %8, %9 : vector<2x32xf32>
    %11 = vector.broadcast %1 : vector<1x32xf32> to vector<2x32xf32>
    %12 = arith.addf %10, %11 : vector<2x32xf32>
    %13 = vector.extract_strided_slice %5 {offsets = [0, 1, 0], sizes = [2, 1, 1], strides = [1, 1, 1]} : vector<2x8x1xf32> to vector<2x1x1xf32>
    %14 = vector.shape_cast %13 : vector<2x1x1xf32> to vector<2x1xf32>
    %15 = vector.broadcast %14 : vector<2x1xf32> to vector<2x32xf32>
    %16 = vector.broadcast %0 : vector<1x32xf32> to vector<2x32xf32>
    %17 = arith.mulf %15, %16 : vector<2x32xf32>
    %18 = vector.broadcast %1 : vector<1x32xf32> to vector<2x32xf32>
    %19 = arith.addf %17, %18 : vector<2x32xf32>
    %20 = vector.extract_strided_slice %5 {offsets = [0, 2, 0], sizes = [2, 1, 1], strides = [1, 1, 1]} : vector<2x8x1xf32> to vector<2x1x1xf32>
    %21 = vector.shape_cast %20 : vector<2x1x1xf32> to vector<2x1xf32>
    %22 = vector.broadcast %21 : vector<2x1xf32> to vector<2x32xf32>
    %23 = vector.broadcast %0 : vector<1x32xf32> to vector<2x32xf32>
    %24 = arith.mulf %22, %23 : vector<2x32xf32>
    %25 = vector.broadcast %1 : vector<1x32xf32> to vector<2x32xf32>
    %26 = arith.addf %24, %25 : vector<2x32xf32>
    %27 = vector.extract_strided_slice %5 {offsets = [0, 3, 0], sizes = [2, 1, 1], strides = [1, 1, 1]} : vector<2x8x1xf32> to vector<2x1x1xf32>
    %28 = vector.shape_cast %27 : vector<2x1x1xf32> to vector<2x1xf32>
    %29 = vector.broadcast %28 : vector<2x1xf32> to vector<2x32xf32>
    %30 = vector.broadcast %0 : vector<1x32xf32> to vector<2x32xf32>
    %31 = arith.mulf %29, %30 : vector<2x32xf32>
    %32 = vector.broadcast %1 : vector<1x32xf32> to vector<2x32xf32>
    %33 = arith.addf %31, %32 : vector<2x32xf32>
    %34 = vector.extract_strided_slice %5 {offsets = [0, 4, 0], sizes = [2, 1, 1], strides = [1, 1, 1]} : vector<2x8x1xf32> to vector<2x1x1xf32>
    %35 = vector.shape_cast %34 : vector<2x1x1xf32> to vector<2x1xf32>
    %36 = vector.broadcast %35 : vector<2x1xf32> to vector<2x32xf32>
    %37 = vector.broadcast %0 : vector<1x32xf32> to vector<2x32xf32>
    %38 = arith.mulf %36, %37 : vector<2x32xf32>
    %39 = vector.broadcast %1 : vector<1x32xf32> to vector<2x32xf32>
    %40 = arith.addf %38, %39 : vector<2x32xf32>
    %41 = vector.extract_strided_slice %5 {offsets = [0, 5, 0], sizes = [2, 1, 1], strides = [1, 1, 1]} : vector<2x8x1xf32> to vector<2x1x1xf32>
    %42 = vector.shape_cast %41 : vector<2x1x1xf32> to vector<2x1xf32>
    %43 = vector.broadcast %42 : vector<2x1xf32> to vector<2x32xf32>
    %44 = vector.broadcast %0 : vector<1x32xf32> to vector<2x32xf32>
    %45 = arith.mulf %43, %44 : vector<2x32xf32>
    %46 = vector.broadcast %1 : vector<1x32xf32> to vector<2x32xf32>
    %47 = arith.addf %45, %46 : vector<2x32xf32>
    %48 = vector.extract_strided_slice %5 {offsets = [0, 6, 0], sizes = [2, 1, 1], strides = [1, 1, 1]} : vector<2x8x1xf32> to vector<2x1x1xf32>
    %49 = vector.shape_cast %48 : vector<2x1x1xf32> to vector<2x1xf32>
    %50 = vector.broadcast %49 : vector<2x1xf32> to vector<2x32xf32>
    %51 = vector.broadcast %0 : vector<1x32xf32> to vector<2x32xf32>
    %52 = arith.mulf %50, %51 : vector<2x32xf32>
    %53 = vector.broadcast %1 : vector<1x32xf32> to vector<2x32xf32>
    %54 = arith.addf %52, %53 : vector<2x32xf32>
    %55 = vector.extract_strided_slice %5 {offsets = [0, 7, 0], sizes = [2, 1, 1], strides = [1, 1, 1]} : vector<2x8x1xf32> to vector<2x1x1xf32>
    %56 = vector.shape_cast %55 : vector<2x1x1xf32> to vector<2x1xf32>
    %57 = vector.broadcast %56 : vector<2x1xf32> to vector<2x32xf32>
    %58 = vector.broadcast %0 : vector<1x32xf32> to vector<2x32xf32>
    %59 = arith.mulf %57, %58 : vector<2x32xf32>
    %60 = vector.broadcast %1 : vector<1x32xf32> to vector<2x32xf32>
    %61 = arith.addf %59, %60 : vector<2x32xf32>
    %c0_10 = arith.constant 0 : index
    %c0_11 = arith.constant 0 : index
    %62 = vector.load %arg2[%c0_10, %c0_11] : memref<2x32xf32, #tpu.memory_space<vmem>>, vector<2x32xf32>
    %63 = arith.truncf %62 : vector<2x32xf32> to vector<2x32xbf16>
    %cst = arith.constant dense<0.000000e+00> : vector<2x32xf32>
    %64 = tpu.matmul %63, %4, %cst {dimension_numbers = #tpu.dot_dimension_numbers<[1], [0], [0], [1], [0, 0, 1, 1], [], []>} : vector<2x32xbf16>, vector<32x32xbf16>, vector<2x32xf32> -> vector<2x32xf32>
    %65 = arith.addf %12, %64 : vector<2x32xf32>
    %66 = math.tanh %65 : vector<2x32xf32>
    %67 = arith.truncf %66 : vector<2x32xf32> to vector<2x32xbf16>
    %cst_12 = arith.constant dense<0.000000e+00> : vector<2x32xf32>
    %68 = tpu.matmul %67, %4, %cst_12 {dimension_numbers = #tpu.dot_dimension_numbers<[1], [0], [0], [1], [0, 0, 1, 1], [], []>} : vector<2x32xbf16>, vector<32x32xbf16>, vector<2x32xf32> -> vector<2x32xf32>
    %69 = arith.addf %19, %68 : vector<2x32xf32>
    %70 = math.tanh %69 : vector<2x32xf32>
    %71 = arith.truncf %70 : vector<2x32xf32> to vector<2x32xbf16>
    %cst_13 = arith.constant dense<0.000000e+00> : vector<2x32xf32>
    %72 = tpu.matmul %71, %4, %cst_13 {dimension_numbers = #tpu.dot_dimension_numbers<[1], [0], [0], [1], [0, 0, 1, 1], [], []>} : vector<2x32xbf16>, vector<32x32xbf16>, vector<2x32xf32> -> vector<2x32xf32>
    %73 = arith.addf %26, %72 : vector<2x32xf32>
    %74 = math.tanh %73 : vector<2x32xf32>
    %75 = arith.truncf %74 : vector<2x32xf32> to vector<2x32xbf16>
    %cst_14 = arith.constant dense<0.000000e+00> : vector<2x32xf32>
    %76 = tpu.matmul %75, %4, %cst_14 {dimension_numbers = #tpu.dot_dimension_numbers<[1], [0], [0], [1], [0, 0, 1, 1], [], []>} : vector<2x32xbf16>, vector<32x32xbf16>, vector<2x32xf32> -> vector<2x32xf32>
    %77 = arith.addf %33, %76 : vector<2x32xf32>
    %78 = math.tanh %77 : vector<2x32xf32>
    %79 = arith.truncf %78 : vector<2x32xf32> to vector<2x32xbf16>
    %cst_15 = arith.constant dense<0.000000e+00> : vector<2x32xf32>
    %80 = tpu.matmul %79, %4, %cst_15 {dimension_numbers = #tpu.dot_dimension_numbers<[1], [0], [0], [1], [0, 0, 1, 1], [], []>} : vector<2x32xbf16>, vector<32x32xbf16>, vector<2x32xf32> -> vector<2x32xf32>
    %81 = arith.addf %40, %80 : vector<2x32xf32>
    %82 = math.tanh %81 : vector<2x32xf32>
    %83 = arith.truncf %82 : vector<2x32xf32> to vector<2x32xbf16>
    %cst_16 = arith.constant dense<0.000000e+00> : vector<2x32xf32>
    %84 = tpu.matmul %83, %4, %cst_16 {dimension_numbers = #tpu.dot_dimension_numbers<[1], [0], [0], [1], [0, 0, 1, 1], [], []>} : vector<2x32xbf16>, vector<32x32xbf16>, vector<2x32xf32> -> vector<2x32xf32>
    %85 = arith.addf %47, %84 : vector<2x32xf32>
    %86 = math.tanh %85 : vector<2x32xf32>
    %87 = arith.truncf %86 : vector<2x32xf32> to vector<2x32xbf16>
    %cst_17 = arith.constant dense<0.000000e+00> : vector<2x32xf32>
    %88 = tpu.matmul %87, %4, %cst_17 {dimension_numbers = #tpu.dot_dimension_numbers<[1], [0], [0], [1], [0, 0, 1, 1], [], []>} : vector<2x32xbf16>, vector<32x32xbf16>, vector<2x32xf32> -> vector<2x32xf32>
    %89 = arith.addf %54, %88 : vector<2x32xf32>
    %90 = math.tanh %89 : vector<2x32xf32>
    %91 = arith.truncf %90 : vector<2x32xf32> to vector<2x32xbf16>
    %cst_18 = arith.constant dense<0.000000e+00> : vector<2x32xf32>
    %92 = tpu.matmul %91, %4, %cst_18 {dimension_numbers = #tpu.dot_dimension_numbers<[1], [0], [0], [1], [0, 0, 1, 1], [], []>} : vector<2x32xbf16>, vector<32x32xbf16>, vector<2x32xf32> -> vector<2x32xf32>
    %93 = arith.addf %61, %92 : vector<2x32xf32>
    %94 = math.tanh %93 : vector<2x32xf32>
    %c0_19 = arith.constant 0 : index
    %c0_20 = arith.constant 0 : index
    %95 = vector.load %arg9[%c0_19, %c0_20] : memref<2x32xf32, #tpu.memory_space<vmem>>, vector<2x32xf32>
    tpu.vector_store %arg9[%c0_19, %c0_20], %94 {strides = array<i32>} : memref<2x32xf32, #tpu.memory_space<vmem>>, vector<2x32xf32>,
    %96 = vector.shape_cast %66 : vector<2x32xf32> to vector<2x1x32xf32>
    %97 = vector.shape_cast %70 : vector<2x32xf32> to vector<2x1x32xf32>
    %98 = vector.shape_cast %74 : vector<2x32xf32> to vector<2x1x32xf32>
    %99 = vector.shape_cast %78 : vector<2x32xf32> to vector<2x1x32xf32>
    %100 = vector.shape_cast %82 : vector<2x32xf32> to vector<2x1x32xf32>
    %101 = vector.shape_cast %86 : vector<2x32xf32> to vector<2x1x32xf32>
    %102 = vector.shape_cast %90 : vector<2x32xf32> to vector<2x1x32xf32>
    %103 = vector.shape_cast %94 : vector<2x32xf32> to vector<2x1x32xf32>
    %104 = tpu.concatenate %96, %97, %98, %99, %100, %101, %102, %103 in 1 : vector<2x1x32xf32>, vector<2x1x32xf32>, vector<2x1x32xf32>, vector<2x1x32xf32>, vector<2x1x32xf32>, vector<2x1x32xf32>, vector<2x1x32xf32>, vector<2x1x32xf32> -> vector<2x8x32xf32>
    %105 = vector.shape_cast %2 : vector<1x32xf32> to vector<1x1x32xf32>
    %106 = vector.broadcast %105 : vector<1x1x32xf32> to vector<2x8x32xf32>
    %107 = arith.mulf %104, %106 : vector<2x8x32xf32>
    %cst_21 = arith.constant dense<0.000000e+00> : vector<2x8xf32>
    %108 = vector.multi_reduction <add>, %107, %cst_21 [2] : vector<2x8x32xf32> to vector<2x8xf32>
    %c0_22 = arith.constant 0 : index
    %c0_23 = arith.constant 0 : index
    %109 = vector.load %arg7[%c0_22, %c0_23] : memref<1x1xf32, #tpu.memory_space<vmem>>, vector<1x1xf32>
    %110 = vector.broadcast %109 : vector<1x1xf32> to vector<2x8xf32>
    %111 = arith.addf %108, %110 : vector<2x8xf32>
    %c0_24 = arith.constant 0 : index
    %c0_25 = arith.constant 0 : index
    %112 = vector.load %arg8[%c0_24, %c0_25] : memref<2x8xf32, #tpu.memory_space<vmem>>, vector<2x8xf32>
    tpu.vector_store %arg8[%c0_24, %c0_25], %111 {strides = array<i32>} : memref<2x8xf32, #tpu.memory_space<vmem>>, vector<2x8xf32>,
    return
  }
  func.func @transform_0(%arg0: i32) -> (i32, i32, i32) {
    %c0_i32 = arith.constant 0 : i32
    %c0_i32_0 = arith.constant 0 : i32
    %c0_i32_1 = arith.constant 0 : i32
    %c0_i32_2 = arith.constant 0 : i32
    return %c0_i32, %c0_i32_0, %c0_i32_1 : i32, i32, i32
  }
  func.func @transform_1(%arg0: i32) -> (i32, i32) {
    %c0_i32 = arith.constant 0 : i32
    %c0_i32_0 = arith.constant 0 : i32
    %c0_i32_1 = arith.constant 0 : i32
    return %c0_i32, %c0_i32_0 : i32, i32
  }
  func.func @transform_2(%arg0: i32) -> (i32, i32) {
    %c0_i32 = arith.constant 0 : i32
    %c0_i32_0 = arith.constant 0 : i32
    %c0_i32_1 = arith.constant 0 : i32
    return %c0_i32, %c0_i32_0 : i32, i32
  }
  func.func @transform_3(%arg0: i32) -> (i32, i32) {
    %c0_i32 = arith.constant 0 : i32
    %c0_i32_0 = arith.constant 0 : i32
    %c0_i32_1 = arith.constant 0 : i32
    return %c0_i32, %c0_i32_0 : i32, i32
  }
  func.func @transform_4(%arg0: i32) -> (i32, i32) {
    %c0_i32 = arith.constant 0 : i32
    %c0_i32_0 = arith.constant 0 : i32
    %c0_i32_1 = arith.constant 0 : i32
    return %c0_i32, %c0_i32_0 : i32, i32
  }
  func.func @transform_5(%arg0: i32) -> (i32, i32) {
    %c0_i32 = arith.constant 0 : i32
    %c0_i32_0 = arith.constant 0 : i32
    %c0_i32_1 = arith.constant 0 : i32
    return %c0_i32, %c0_i32_0 : i32, i32
  }
  func.func @transform_6(%arg0: i32) -> (i32, i32) {
    %c0_i32 = arith.constant 0 : i32
    %c0_i32_0 = arith.constant 0 : i32
    %c0_i32_1 = arith.constant 0 : i32
    return %c0_i32, %c0_i32_0 : i32, i32
  }
  func.func @transform_7(%arg0: i32) -> (i32, i32) {
    %c0_i32 = arith.constant 0 : i32
    %c0_i32_0 = arith.constant 0 : i32
    %c0_i32_1 = arith.constant 0 : i32
    return %c0_i32, %c0_i32_0 : i32, i32
  }
  func.func @transform_8(%arg0: i32) -> (i32, i32) {
    %c0_i32 = arith.constant 0 : i32
    %c0_i32_0 = arith.constant 0 : i32
    %c0_i32_1 = arith.constant 0 : i32
    return %c0_i32, %c0_i32_0 : i32, i32
  }
}

</mosaic_0001>

<llo_original>
// kernel: tpu_custom_call.1
$region0: #{tpu_custom_call.1}
  #allocation0 [shape = 'u32[]', space=smem, size = 0x4, offset = 0x4, fixed_abs, tag = 'smem constant byte address 0x4 - core index']
  #allocation1 [shape = 'u32[144,128]{1,0:T(1,128)}', space=vmem, size = 0x12000, scoped, tag = 'internal scratch']
  #allocation2 [shape = 'f32[1,1]{1,0:T(1,128)S(1)}', space=vmem, size = 0x200, scoped, tag = 'scoped memory for tpu_custom_call.1']
  %s0 = inlined_call_operand.vmem [shape: f32[2,8,1], index: 0, kind: input, shape index: {}]
  %s1 = inlined_call_operand.hbm [shape: f32[2,32], index: 1, kind: input, shape index: {}]
  %s2 = inlined_call_operand.vmem [shape: f32[1,32], index: 2, kind: input, shape index: {}]
  %s3 = inlined_call_operand.vmem [shape: f32[32,32], index: 3, kind: input, shape index: {}]
  %s4 = inlined_call_operand.vmem [shape: f32[1,32], index: 4, kind: input, shape index: {}]
  %s5 = inlined_call_operand.vmem [shape: f32[1,32], index: 5, kind: input, shape index: {}]
  %s6 = inlined_call_operand.<no memory space> [shape: f32[1,1], index: 6, kind: input, shape index: {}]
  %s7 = inlined_call_operand.hbm [shape: f32[2,8], index: 7, kind: output, shape index: {0}]
  %s8 = inlined_call_operand.hbm [shape: f32[2,32], index: 8, kind: output, shape index: {1}]
  %9 = xla_tuple %s7, %s8
  %s10 = sld [smem:[#allocation0]]
  $region50: #{tpu_custom_call.1} parent=0
    _
  %s12 = ssub.s32 1, %s10
  %s13 = scalar_select 0, %s12, %s10
  %v14 = vstv %s6
  %15 = vst [vmem:[#allocation2] sm:$0x1] %v14
  $region1: #{tpu_custom_call.1} parent=0
    #allocation3 [shape = 'u8[1024]{0}', space=vmem, size = 0x400, scoped, tag = 'input window, operand 1, single buffered']
    #allocation4 [shape = 's32[1]{0}', space=sflag, size = 0x4, scoped, tag = 'scoped memory for tpu_custom_call.1']
    #allocation5 [shape = 's32[1]{0}', space=sflag, size = 0x4, scoped, tag = 'scoped memory for tpu_custom_call.1']
    #allocation6 [shape = 'u8[1024]{0}', space=vmem, size = 0x400, scoped, tag = 'output window, operand 0, single buffered']
    #allocation7 [shape = 'u8[1024]{0}', space=vmem, size = 0x400, scoped, tag = 'output window, operand 1, single buffered']
    #allocation8 [shape = 's32[1]{0}', space=sflag, size = 0x4, scoped, tag = 'scoped memory for tpu_custom_call.1']
    %16 = vsyncpa [#allocation4], 0
    %17 = vsyncpa [#allocation5], 0
    %18 = vsyncpa [#allocation8], 0
    // Predicated region
    $region2: #{tpu_custom_call.1} parent=1 // pred_check
      _
    $region3: #{tpu_custom_call.1} parent=1 // pred_check_branch
      %20 = sbr.rel (0) target = $region5
    $region4: #{tpu_custom_call.1} parent=1 // pred_region
      _
    $region5: #{tpu_custom_call.1} parent=1 // pred_fallthru
      _
    // Predicated region
    $region6: #{tpu_custom_call.1} parent=1 // pred_check
      _
    $region7: #{tpu_custom_call.1} parent=1 // pred_check_branch
      %22 = sbr.rel (0) target = $region9
    $region8: #{tpu_custom_call.1} parent=1 // pred_region
      %s24 = ssub.s32 32, 32
      %25 = vsyncadd [#allocation4], %s24
      %s27 = sshll.u32 [#allocation3], 4
      %s28 = int_to_ptr.vmem [resolvable:$true] %s27
      %30 = dma.hbm_to_vmem [thread:$0]  %s1, 32, %s28, [#allocation4]
    $region9: #{tpu_custom_call.1} parent=1 // pred_fallthru
      _
    // Predicated region
    $region10: #{tpu_custom_call.1} parent=1 // pred_check
      _
    $region11: #{tpu_custom_call.1} parent=1 // pred_check_branch
      %32 = sbr.rel (0) target = $region13
    $region12: #{tpu_custom_call.1} parent=1 // pred_region
      _
    $region13: #{tpu_custom_call.1} parent=1 // pred_fallthru
      _
    // Predicated region
    $region14: #{tpu_custom_call.1} parent=1 // pred_check
      _
    $region15: #{tpu_custom_call.1} parent=1 // pred_check_branch
      %34 = sbr.rel (0) target = $region17
    $region16: #{tpu_custom_call.1} parent=1 // pred_region
      _
    $region17: #{tpu_custom_call.1} parent=1 // pred_fallthru
      _
    // Predicated region
    $region18: #{tpu_custom_call.1} parent=1 // pred_check
      _
    $region19: #{tpu_custom_call.1} parent=1 // pred_check_branch
      %36 = sbr.rel (0) target = $region21
    $region20: #{tpu_custom_call.1} parent=1 // pred_region
      _
    $region21: #{tpu_custom_call.1} parent=1 // pred_fallthru
      _
    // Predicated region
    $region22: #{tpu_custom_call.1} parent=1 // pred_check
      _
    $region23: #{tpu_custom_call.1} parent=1 // pred_check_branch
      %38 = sbr.rel (0) target = $region25
    $region24: #{tpu_custom_call.1} parent=1 // pred_region
      _
    $region25: #{tpu_custom_call.1} parent=1 // pred_fallthru
      _
    // Predicated region
    $region26: #{tpu_custom_call.1} parent=1 // pred_check
      _
    $region27: #{tpu_custom_call.1} parent=1 // pred_check_branch
      %40 = sbr.rel (0) target = $region29
    $region28: #{tpu_custom_call.1} parent=1 // pred_region
      _
    $region29: #{tpu_custom_call.1} parent=1 // pred_fallthru
      _
    // Predicated region
    $region30: #{tpu_custom_call.1} parent=1 // pred_check
      _
    $region31: #{tpu_custom_call.1} parent=1 // pred_check_branch
      %42 = sbr.rel (0) target = $region33
    $region32: #{tpu_custom_call.1} parent=1 // pred_region
      %43 = dma.done [#allocation4], 32
    $region33: #{tpu_custom_call.1} parent=1 // pred_fallthru
      _
    %v45 = vld [vmem:[%s2] sm:$0x1]
    %v46 = vld [vmem:[%s4] sm:$0x1]
    %v47 = vld [vmem:[%s5] sm:$0x1]
    %v48 = vld [vmem:[%s3] sm:$0xff]
    %v49 = vld [vmem:[%s3 + $0x8] sm:$0xff]
    %v50 = vld [vmem:[%s3 + $0x10] sm:$0xff]
    %v51 = vld [vmem:[%s3 + $0x18] sm:$0xff]
    %v52 = vpack.c.bf16 %v49, %v48
    %v53 = vpack.c.bf16 %v51, %v50
    %v54 = vld [vmem:[%s0] sm:$0xff]
    %v55 = vld [vmem:[%s0 + $0x8] sm:$0xff]
    %57 = vset.pattern.permute.xlu0 0
    %58 = vperm.xlu0 %57, %v54
    %v59 = vpop.permute.xlu0 %58
    %62 = vset.pattern.permute.xlu0 0
    %63 = vperm.xlu0 %62, %v55
    %v64 = vpop.permute.xlu0 %63
    %v67 = vlaneseq
    %v68 = vshrl.u32 %v67, 7
    %v69 = vsub.s32 0, %v68
    %v70 = vrot.slane %v45, %v69
    %v72 = vmul.f32 %v59, %v70
    %v73 = vmul.f32 %v64, %v70
    %v75 = vlaneseq
    %v76 = vshrl.u32 %v75, 7
    %v77 = vsub.s32 0, %v76
    %v78 = vrot.slane %v46, %v77
    %v80 = vadd.f32 %v72, %v78
    %v81 = vadd.f32 %v73, %v78
    %v82 = vld [vmem:[#allocation3] sm:$0x3]
    %v83 = vpack.c.bf16 %v82, %v82
    %vm84 = vcmask 261120
    %v86 = vsel %vm84, %v83, 0
    %88 = vmatprep.subr.bf16.mxu0 0
    %89 = vmatpush1.bf16.msra.mxu0 %v52
    %90 = vmatprep.subr.bf16.mxu0 0
    %91 = vmatpush1.bf16.msra.mxu0 %v53
    %92 = vmatprep.subr.bf16.mxu0 0
    %93 = vmatpush1.bf16.msra.mxu0 0
    %94 = vmatprep.subr.bf16.mxu0 0
    %95 = vmatpush1.bf16.msra.mxu0 0
    %96 = vmatprep.subr.bf16.mxu0 0
    %97 = vmatpush1.bf16.msra.mxu0 0
    %98 = vmatprep.subr.bf16.mxu0 0
    %99 = vmatpush1.bf16.msra.mxu0 0
    %100 = vmatprep.subr.bf16.mxu0 0
    %101 = vmatpush1.bf16.msra.mxu0 0
    %102 = vmatprep.subr.bf16.mxu0 0
    %103 = vmatpush1.bf16.msra.mxu0 0
    %104 = vmatprep.subr.bf16.mxu0 0
    %105 = vmatpush1.bf16.msra.mxu0 0
    %106 = vmatprep.subr.bf16.mxu0 0
    %107 = vmatpush1.bf16.msra.mxu0 0
    %108 = vmatprep.subr.bf16.mxu0 0
    %109 = vmatpush1.bf16.msra.mxu0 0
    %110 = vmatprep.subr.bf16.mxu0 0
    %111 = vmatpush1.bf16.msra.mxu0 0
    %112 = vmatprep.subr.bf16.mxu0 0
    %113 = vmatpush1.bf16.msra.mxu0 0
    %114 = vmatprep.subr.bf16.mxu0 0
    %115 = vmatpush1.bf16.msra.mxu0 0
    %116 = vmatprep.subr.bf16.mxu0 0
    %117 = vmatpush1.bf16.msra.mxu0 0
    %118 = vmatprep.subr.bf16.mxu0 0
    %119 = vmatpush1.bf16.msra.mxu0 0
    %120 = vmatprep.mubr.bf16.mxu0 0
    %121 = vmatmul.mubr.bf16.gmra.mrb[0].mxu0 %v86
    %v122 = vpop.f32.mrb[0].mxu0
    %v123 = vadd.f32 0.0, %v122
    %v124 = vpop.f32.mrb[0].mxu0
    %v125 = vpop.f32.mrb[0].mxu0
    %v126 = vpop.f32.mrb[0].mxu0
    %127 = vdwg.mxu0
    %v129 = vrot.slane %v123, 1
    %v132 = vadd.f32 %v80, %v123
    %v133 = vadd.f32 %v81, %v129
    %v134 = vtanh.pop %v132
    %v135 = vtanh.pop %v133
    %v136 = vpack.c.bf16 %v134, %v134
    %v137 = vpack.c.bf16 %v135, %v135
    %v140 = vunpack.c.l.b16 %v136
    %v141 = vunpack.c.l.b16 %v137
    %v142 = vrot.slane %v141, 7
    %vm143 = vcmask 1041409
    %v144 = vsel %vm143, %v142, %v140
    %v145 = vpack.c.b16 %v144, %v144
    %v147 = vsel %vm84, %v145, 0
    %149 = vmatprep.subr.bf16.mxu0 0
    %150 = vmatpush1.bf16.msra.mxu0 %v52
    %151 = vmatprep.subr.bf16.mxu0 0
    %152 = vmatpush1.bf16.msra.mxu0 %v53
    %153 = vmatprep.subr.bf16.mxu0 0
    %154 = vmatpush1.bf16.msra.mxu0 0
    %155 = vmatprep.subr.bf16.mxu0 0
    %156 = vmatpush1.bf16.msra.mxu0 0
    %157 = vmatprep.subr.bf16.mxu0 0
    %158 = vmatpush1.bf16.msra.mxu0 0
    %159 = vmatprep.subr.bf16.mxu0 0
    %160 = vmatpush1.bf16.msra.mxu0 0
    %161 = vmatprep.subr.bf16.mxu0 0
    %162 = vmatpush1.bf16.msra.mxu0 0
    %163 = vmatprep.subr.bf16.mxu0 0
    %164 = vmatpush1.bf16.msra.mxu0 0
    %165 = vmatprep.subr.bf16.mxu0 0
    %166 = vmatpush1.bf16.msra.mxu0 0
    %167 = vmatprep.subr.bf16.mxu0 0
    %168 = vmatpush1.bf16.msra.mxu0 0
    %169 = vmatprep.subr.bf16.mxu0 0
    %170 = vmatpush1.bf16.msra.mxu0 0
    %171 = vmatprep.subr.bf16.mxu0 0
    %172 = vmatpush1.bf16.msra.mxu0 0
    %173 = vmatprep.subr.bf16.mxu0 0
    %174 = vmatpush1.bf16.msra.mxu0 0
    %175 = vmatprep.subr.bf16.mxu0 0
    %176 = vmatpush1.bf16.msra.mxu0 0
    %177 = vmatprep.subr.bf16.mxu0 0
    %178 = vmatpush1.bf16.msra.mxu0 0
    %179 = vmatprep.subr.bf16.mxu0 0
    %180 = vmatpush1.bf16.msra.mxu0 0
    %181 = vmatprep.mubr.bf16.mxu0 0
    %182 = vmatmul.mubr.bf16.gmra.mrb[0].mxu0 %v147
    %v183 = vpop.f32.mrb[0].mxu0
    %v184 = vadd.f32 0.0, %v183
    %v185 = vpop.f32.mrb[0].mxu0
    %v186 = vpop.f32.mrb[0].mxu0
    %v187 = vpop.f32.mrb[0].mxu0
    %188 = vdwg.mxu0
    %v190 = vrot.slane %v184, 7
    %v193 = vadd.f32 %v80, %v190
    %v194 = vadd.f32 %v81, %v184
    %v195 = vtanh.pop %v193
    %v196 = vtanh.pop %v194
    %v197 = vpack.c.bf16 %v195, %v195
    %v198 = vpack.c.bf16 %v196, %v196
    %v201 = vunpack.c.l.b16 %v197
    %v202 = vunpack.c.l.b16 %v198
    %v203 = vrot.slane %v201, 1
    %v204 = vsel %vm143, %v202, %v203
    %v205 = vpack.c.b16 %v204, %v204
    %v207 = vsel %vm84, %v205, 0
    %209 = vmatprep.subr.bf16.mxu0 0
    %210 = vmatpush1.bf16.msra.mxu0 %v52
    %211 = vmatprep.subr.bf16.mxu0 0
    %212 = vmatpush1.bf16.msra.mxu0 %v53
    %213 = vmatprep.subr.bf16.mxu0 0
    %214 = vmatpush1.bf16.msra.mxu0 0
    %215 = vmatprep.subr.bf16.mxu0 0
    %216 = vmatpush1.bf16.msra.mxu0 0
    %217 = vmatprep.subr.bf16.mxu0 0
    %218 = vmatpush1.bf16.msra.mxu0 0
    %219 = vmatprep.subr.bf16.mxu0 0
    %220 = vmatpush1.bf16.msra.mxu0 0
    %221 = vmatprep.subr.bf16.mxu0 0
    %222 = vmatpush1.bf16.msra.mxu0 0
    %223 = vmatprep.subr.bf16.mxu0 0
    %224 = vmatpush1.bf16.msra.mxu0 0
    %225 = vmatprep.subr.bf16.mxu0 0
    %226 = vmatpush1.bf16.msra.mxu0 0
    %227 = vmatprep.subr.bf16.mxu0 0
    %228 = vmatpush1.bf16.msra.mxu0 0
    %229 = vmatprep.subr.bf16.mxu0 0
    %230 = vmatpush1.bf16.msra.mxu0 0
    %231 = vmatprep.subr.bf16.mxu0 0
    %232 = vmatpush1.bf16.msra.mxu0 0
    %233 = vmatprep.subr.bf16.mxu0 0
    %234 = vmatpush1.bf16.msra.mxu0 0
    %235 = vmatprep.subr.bf16.mxu0 0
    %236 = vmatpush1.bf16.msra.mxu0 0
    %237 = vmatprep.subr.bf16.mxu0 0
    %238 = vmatpush1.bf16.msra.mxu0 0
    %239 = vmatprep.subr.bf16.mxu0 0
    %240 = vmatpush1.bf16.msra.mxu0 0
    %241 = vmatprep.mubr.bf16.mxu0 0
    %242 = vmatmul.mubr.bf16.gmra.mrb[0].mxu0 %v207
    %v243 = vpop.f32.mrb[0].mxu0
    %v244 = vadd.f32 0.0, %v243
    %v245 = vpop.f32.mrb[0].mxu0
    %v246 = vpop.f32.mrb[0].mxu0
    %v247 = vpop.f32.mrb[0].mxu0
    %248 = vdwg.mxu0
    %v250 = vrot.slane %v244, 6
    %v251 = vrot.slane %v244, 7
    %v254 = vadd.f32 %v80, %v250
    %v255 = vadd.f32 %v81, %v251
    %v256 = vtanh.pop %v254
    %v257 = vtanh.pop %v255
    %v258 = vpack.c.bf16 %v256, %v256
    %v259 = vpack.c.bf16 %v257, %v257
    %v262 = vunpack.c.l.b16 %v258
    %v263 = vunpack.c.l.b16 %v259
    %v264 = vrot.slane %v262, 2
    %v265 = vrot.slane %v263, 1
    %v266 = vsel %vm143, %v265, %v264
    %v267 = vpack.c.b16 %v266, %v266
    %v269 = vsel %vm84, %v267, 0
    %271 = vmatprep.subr.bf16.mxu0 0
    %272 = vmatpush1.bf16.msra.mxu0 %v52
    %273 = vmatprep.subr.bf16.mxu0 0
    %274 = vmatpush1.bf16.msra.mxu0 %v53
    %275 = vmatprep.subr.bf16.mxu0 0
    %276 = vmatpush1.bf16.msra.mxu0 0
    %277 = vmatprep.subr.bf16.mxu0 0
    %278 = vmatpush1.bf16.msra.mxu0 0
    %279 = vmatprep.subr.bf16.mxu0 0
    %280 = vmatpush1.bf16.msra.mxu0 0
    %281 = vmatprep.subr.bf16.mxu0 0
    %282 = vmatpush1.bf16.msra.mxu0 0
    %283 = vmatprep.subr.bf16.mxu0 0
    %284 = vmatpush1.bf16.msra.mxu0 0
    %285 = vmatprep.subr.bf16.mxu0 0
    %286 = vmatpush1.bf16.msra.mxu0 0
    %287 = vmatprep.subr.bf16.mxu0 0
    %288 = vmatpush1.bf16.msra.mxu0 0
    %289 = vmatprep.subr.bf16.mxu0 0
    %290 = vmatpush1.bf16.msra.mxu0 0
    %291 = vmatprep.subr.bf16.mxu0 0
    %292 = vmatpush1.bf16.msra.mxu0 0
    %293 = vmatprep.subr.bf16.mxu0 0
    %294 = vmatpush1.bf16.msra.mxu0 0
    %295 = vmatprep.subr.bf16.mxu0 0
    %296 = vmatpush1.bf16.msra.mxu0 0
    %297 = vmatprep.subr.bf16.mxu0 0
    %298 = vmatpush1.bf16.msra.mxu0 0
    %299 = vmatprep.subr.bf16.mxu0 0
    %300 = vmatpush1.bf16.msra.mxu0 0
    %301 = vmatprep.subr.bf16.mxu0 0
    %302 = vmatpush1.bf16.msra.mxu0 0
    %303 = vmatprep.mubr.bf16.mxu0 0
    %304 = vmatmul.mubr.bf16.gmra.mrb[0].mxu0 %v269
    %v305 = vpop.f32.mrb[0].mxu0
    %v306 = vadd.f32 0.0, %v305
    %v307 = vpop.f32.mrb[0].mxu0
    %v308 = vpop.f32.mrb[0].mxu0
    %v309 = vpop.f32.mrb[0].mxu0
    %310 = vdwg.mxu0
    %v312 = vrot.slane %v306, 5
    %v313 = vrot.slane %v306, 6
    %v316 = vadd.f32 %v80, %v312
    %v317 = vadd.f32 %v81, %v313
    %v318 = vtanh.pop %v316
    %v319 = vtanh.pop %v317
    %v320 = vpack.c.bf16 %v318, %v318
    %v321 = vpack.c.bf16 %v319, %v319
    %v324 = vunpack.c.l.b16 %v320
    %v325 = vunpack.c.l.b16 %v321
    %v326 = vrot.slane %v324, 3
    %v327 = vrot.slane %v325, 2
    %v328 = vsel %vm143, %v327, %v326
    %v329 = vpack.c.b16 %v328, %v328
    %v331 = vsel %vm84, %v329, 0
    %333 = vmatprep.subr.bf16.mxu0 0
    %334 = vmatpush1.bf16.msra.mxu0 %v52
    %335 = vmatprep.subr.bf16.mxu0 0
    %336 = vmatpush1.bf16.msra.mxu0 %v53
    %337 = vmatprep.subr.bf16.mxu0 0
    %338 = vmatpush1.bf16.msra.mxu0 0
    %339 = vmatprep.subr.bf16.mxu0 0
    %340 = vmatpush1.bf16.msra.mxu0 0
    %341 = vmatprep.subr.bf16.mxu0 0
    %342 = vmatpush1.bf16.msra.mxu0 0
    %343 = vmatprep.subr.bf16.mxu0 0
    %344 = vmatpush1.bf16.msra.mxu0 0
    %345 = vmatprep.subr.bf16.mxu0 0
    %346 = vmatpush1.bf16.msra.mxu0 0
    %347 = vmatprep.subr.bf16.mxu0 0
    %348 = vmatpush1.bf16.msra.mxu0 0
    %349 = vmatprep.subr.bf16.mxu0 0
    %350 = vmatpush1.bf16.msra.mxu0 0
    %351 = vmatprep.subr.bf16.mxu0 0
    %352 = vmatpush1.bf16.msra.mxu0 0
    %353 = vmatprep.subr.bf16.mxu0 0
    %354 = vmatpush1.bf16.msra.mxu0 0
    %355 = vmatprep.subr.bf16.mxu0 0
    %356 = vmatpush1.bf16.msra.mxu0 0
    %357 = vmatprep.subr.bf16.mxu0 0
    %358 = vmatpush1.bf16.msra.mxu0 0
    %359 = vmatprep.subr.bf16.mxu0 0
    %360 = vmatpush1.bf16.msra.mxu0 0
    %361 = vmatprep.subr.bf16.mxu0 0
    %362 = vmatpush1.bf16.msra.mxu0 0
    %363 = vmatprep.subr.bf16.mxu0 0
    %364 = vmatpush1.bf16.msra.mxu0 0
    %365 = vmatprep.mubr.bf16.mxu0 0
    %366 = vmatmul.mubr.bf16.gmra.mrb[0].mxu0 %v331
    %v367 = vpop.f32.mrb[0].mxu0
    %v368 = vadd.f32 0.0, %v367
    %v369 = vpop.f32.mrb[0].mxu0
    %v370 = vpop.f32.mrb[0].mxu0
    %v371 = vpop.f32.mrb[0].mxu0
    %372 = vdwg.mxu0
    %v374 = vrot.slane %v368, 4
    %v375 = vrot.slane %v368, 5
    %v378 = vadd.f32 %v80, %v374
    %v379 = vadd.f32 %v81, %v375
    %v380 = vtanh.pop %v378
    %v381 = vtanh.pop %v379
    %v382 = vpack.c.bf16 %v380, %v380
    %v383 = vpack.c.bf16 %v381, %v381
    %v386 = vunpack.c.l.b16 %v382
    %v387 = vunpack.c.l.b16 %v383
    %v388 = vrot.slane %v386, 4
    %v389 = vrot.slane %v387, 3
    %v390 = vsel %vm143, %v389, %v388
    %v391 = vpack.c.b16 %v390, %v390
    %v393 = vsel %vm84, %v391, 0
    %395 = vmatprep.subr.bf16.mxu0 0
    %396 = vmatpush1.bf16.msra.mxu0 %v52
    %397 = vmatprep.subr.bf16.mxu0 0
    %398 = vmatpush1.bf16.msra.mxu0 %v53
    %399 = vmatprep.subr.bf16.mxu0 0
    %400 = vmatpush1.bf16.msra.mxu0 0
    %401 = vmatprep.subr.bf16.mxu0 0
    %402 = vmatpush1.bf16.msra.mxu0 0
    %403 = vmatprep.subr.bf16.mxu0 0
    %404 = vmatpush1.bf16.msra.mxu0 0
    %405 = vmatprep.subr.bf16.mxu0 0
    %406 = vmatpush1.bf16.msra.mxu0 0
    %407 = vmatprep.subr.bf16.mxu0 0
    %408 = vmatpush1.bf16.msra.mxu0 0
    %409 = vmatprep.subr.bf16.mxu0 0
    %410 = vmatpush1.bf16.msra.mxu0 0
    %411 = vmatprep.subr.bf16.mxu0 0
    %412 = vmatpush1.bf16.msra.mxu0 0
    %413 = vmatprep.subr.bf16.mxu0 0
    %414 = vmatpush1.bf16.msra.mxu0 0
    %415 = vmatprep.subr.bf16.mxu0 0
    %416 = vmatpush1.bf16.msra.mxu0 0
    %417 = vmatprep.subr.bf16.mxu0 0
    %418 = vmatpush1.bf16.msra.mxu0 0
    %419 = vmatprep.subr.bf16.mxu0 0
    %420 = vmatpush1.bf16.msra.mxu0 0
    %421 = vmatprep.subr.bf16.mxu0 0
    %422 = vmatpush1.bf16.msra.mxu0 0
    %423 = vmatprep.subr.bf16.mxu0 0
    %424 = vmatpush1.bf16.msra.mxu0 0
    %425 = vmatprep.subr.bf16.mxu0 0
    %426 = vmatpush1.bf16.msra.mxu0 0
    %427 = vmatprep.mubr.bf16.mxu0 0
    %428 = vmatmul.mubr.bf16.gmra.mrb[0].mxu0 %v393
    %v429 = vpop.f32.mrb[0].mxu0
    %v430 = vadd.f32 0.0, %v429
    %v431 = vpop.f32.mrb[0].mxu0
    %v432 = vpop.f32.mrb[0].mxu0
    %v433 = vpop.f32.mrb[0].mxu0
    %434 = vdwg.mxu0
    %v436 = vrot.slane %v430, 3
    %v437 = vrot.slane %v430, 4
    %v440 = vadd.f32 %v80, %v436
    %v441 = vadd.f32 %v81, %v437
    %v442 = vtanh.pop %v440
    %v443 = vtanh.pop %v441
    %v444 = vpack.c.bf16 %v442, %v442
    %v445 = vpack.c.bf16 %v443, %v443
    %v448 = vunpack.c.l.b16 %v444
    %v449 = vunpack.c.l.b16 %v445
    %v450 = vrot.slane %v448, 5
    %v451 = vrot.slane %v449, 4
    %v452 = vsel %vm143, %v451, %v450
    %v453 = vpack.c.b16 %v452, %v452
    %v455 = vsel %vm84, %v453, 0
    %457 = vmatprep.subr.bf16.mxu0 0
    %458 = vmatpush1.bf16.msra.mxu0 %v52
    %459 = vmatprep.subr.bf16.mxu0 0
    %460 = vmatpush1.bf16.msra.mxu0 %v53
    %461 = vmatprep.subr.bf16.mxu0 0
    %462 = vmatpush1.bf16.msra.mxu0 0
    %463 = vmatprep.subr.bf16.mxu0 0
    %464 = vmatpush1.bf16.msra.mxu0 0
    %465 = vmatprep.subr.bf16.mxu0 0
    %466 = vmatpush1.bf16.msra.mxu0 0
    %467 = vmatprep.subr.bf16.mxu0 0
    %468 = vmatpush1.bf16.msra.mxu0 0
    %469 = vmatprep.subr.bf16.mxu0 0
    %470 = vmatpush1.bf16.msra.mxu0 0
    %471 = vmatprep.subr.bf16.mxu0 0
    %472 = vmatpush1.bf16.msra.mxu0 0
    %473 = vmatprep.subr.bf16.mxu0 0
    %474 = vmatpush1.bf16.msra.mxu0 0
    %475 = vmatprep.subr.bf16.mxu0 0
    %476 = vmatpush1.bf16.msra.mxu0 0
    %477 = vmatprep.subr.bf16.mxu0 0
    %478 = vmatpush1.bf16.msra.mxu0 0
    %479 = vmatprep.subr.bf16.mxu0 0
    %480 = vmatpush1.bf16.msra.mxu0 0
    %481 = vmatprep.subr.bf16.mxu0 0
    %482 = vmatpush1.bf16.msra.mxu0 0
    %483 = vmatprep.subr.bf16.mxu0 0
    %484 = vmatpush1.bf16.msra.mxu0 0
    %485 = vmatprep.subr.bf16.mxu0 0
    %486 = vmatpush1.bf16.msra.mxu0 0
    %487 = vmatprep.subr.bf16.mxu0 0
    %488 = vmatpush1.bf16.msra.mxu0 0
    %489 = vmatprep.mubr.bf16.mxu0 0
    %490 = vmatmul.mubr.bf16.gmra.mrb[0].mxu0 %v455
    %v491 = vpop.f32.mrb[0].mxu0
    %v492 = vadd.f32 0.0, %v491
    %v493 = vpop.f32.mrb[0].mxu0
    %v494 = vpop.f32.mrb[0].mxu0
    %v495 = vpop.f32.mrb[0].mxu0
    %496 = vdwg.mxu0
    %v498 = vrot.slane %v492, 2
    %v499 = vrot.slane %v492, 3
    %v502 = vadd.f32 %v80, %v498
    %v503 = vadd.f32 %v81, %v499
    %v504 = vtanh.pop %v502
    %v505 = vtanh.pop %v503
    %v506 = vpack.c.bf16 %v504, %v504
    %v507 = vpack.c.bf16 %v505, %v505
    %v510 = vunpack.c.l.b16 %v506
    %v511 = vunpack.c.l.b16 %v507
    %v512 = vrot.slane %v510, 6
    %v513 = vrot.slane %v511, 5
    %v514 = vsel %vm143, %v513, %v512
    %v515 = vpack.c.b16 %v514, %v514
    %v517 = vsel %vm84, %v515, 0
    %519 = vmatprep.subr.bf16.mxu0 0
    %520 = vmatpush1.bf16.msra.mxu0 %v52
    %521 = vmatprep.subr.bf16.mxu0 0
    %522 = vmatpush1.bf16.msra.mxu0 %v53
    %523 = vmatprep.subr.bf16.mxu0 0
    %524 = vmatpush1.bf16.msra.mxu0 0
    %525 = vmatprep.subr.bf16.mxu0 0
    %526 = vmatpush1.bf16.msra.mxu0 0
    %527 = vmatprep.subr.bf16.mxu0 0
    %528 = vmatpush1.bf16.msra.mxu0 0
    %529 = vmatprep.subr.bf16.mxu0 0
    %530 = vmatpush1.bf16.msra.mxu0 0
    %531 = vmatprep.subr.bf16.mxu0 0
    %532 = vmatpush1.bf16.msra.mxu0 0
    %533 = vmatprep.subr.bf16.mxu0 0
    %534 = vmatpush1.bf16.msra.mxu0 0
    %535 = vmatprep.subr.bf16.mxu0 0
    %536 = vmatpush1.bf16.msra.mxu0 0
    %537 = vmatprep.subr.bf16.mxu0 0
    %538 = vmatpush1.bf16.msra.mxu0 0
    %539 = vmatprep.subr.bf16.mxu0 0
    %540 = vmatpush1.bf16.msra.mxu0 0
    %541 = vmatprep.subr.bf16.mxu0 0
    %542 = vmatpush1.bf16.msra.mxu0 0
    %543 = vmatprep.subr.bf16.mxu0 0
    %544 = vmatpush1.bf16.msra.mxu0 0
    %545 = vmatprep.subr.bf16.mxu0 0
    %546 = vmatpush1.bf16.msra.mxu0 0
    %547 = vmatprep.subr.bf16.mxu0 0
    %548 = vmatpush1.bf16.msra.mxu0 0
    %549 = vmatprep.subr.bf16.mxu0 0
    %550 = vmatpush1.bf16.msra.mxu0 0
    %551 = vmatprep.mubr.bf16.mxu0 0
    %552 = vmatmul.mubr.bf16.gmra.mrb[0].mxu0 %v517
    %v553 = vpop.f32.mrb[0].mxu0
    %v554 = vadd.f32 0.0, %v553
    %v555 = vpop.f32.mrb[0].mxu0
    %v556 = vpop.f32.mrb[0].mxu0
    %v557 = vpop.f32.mrb[0].mxu0
    %558 = vdwg.mxu0
    %v560 = vrot.slane %v554, 1
    %v561 = vrot.slane %v554, 2
    %v564 = vadd.f32 %v80, %v560
    %v565 = vadd.f32 %v81, %v561
    %v566 = vtanh.pop %v564
    %v567 = vtanh.pop %v565
    %v570 = vrot.slane %v567, 7
    %vm573 = vcmask 261127
    %574 = vst.msk [vmem:[#allocation7 - $0x7] sm:$0x80] %vm573, %v566
    %vm575 = vcmask 253952
    %576 = vst.msk [vmem:[#allocation7 + $0x1] sm:$0x1] %vm575, %v570
    %vm577 = vcmask 1040384
    %v578 = vsel %vm577, %v134, %v195
    %v579 = vsel %vm577, %v135, %v196
    %vm580 = vcmask 1041408
    %v581 = vsel %vm580, %v578, %v256
    %v582 = vsel %vm580, %v579, %v257
    %vm583 = vcmask 1042432
    %v584 = vsel %vm583, %v581, %v318
    %v585 = vsel %vm583, %v582, %v319
    %vm586 = vcmask 1043456
    %v587 = vsel %vm586, %v584, %v380
    %v588 = vsel %vm586, %v585, %v381
    %vm589 = vcmask 1044480
    %v590 = vsel %vm589, %v587, %v442
    %v591 = vsel %vm589, %v588, %v443
    %vm592 = vcmask 1045504
    %v593 = vsel %vm592, %v590, %v504
    %v594 = vsel %vm592, %v591, %v505
    %vm595 = vcmask 1046528
    %v596 = vsel %vm595, %v593, %v566
    %v597 = vsel %vm595, %v594, %v567
    %v599 = vlaneseq
    %v600 = vshrl.u32 %v599, 7
    %v601 = vsub.s32 0, %v600
    %v602 = vrot.slane %v47, %v601
    %v604 = vmul.f32 %v596, %v602
    %v605 = vmul.f32 %v597, %v602
    %v606 = vsel %vm84, %v604, 0.0
    %607 = vadd.xlane.f32.xlu0 %v606
    %v608 = vpop.xlane.xlu0 %607
    %v609 = vsel %vm84, %v605, 0.0
    %610 = vadd.xlane.f32.xlu0 %v609
    %v611 = vpop.xlane.xlu0 %610
    %v612 = vld [vmem:[#allocation2] sm:$0x1]
    %v614 = vlaneseq
    %v615 = vshrl.u32 %v614, 7
    %v616 = vsub.s32 0, %v615
    %v617 = vrot.slane %v612, %v616
    %618 = vset.pattern.permute.xlu0 0
    %619 = vperm.xlu0 %618, %v617
    %v620 = vpop.permute.xlu0 %619
    %v622 = vadd.f32 %v608, %v620
    %v623 = vadd.f32 %v611, %v620
    %v626 = vlaneseq
    %v627 = vand.u32 %v626, 127
    %v628 = vlaneseq
    %v629 = vshrl.u32 %v628, 7
    %v630 = vsub.s32 %v627, %v629
    %v631 = vrot.slane %v622, %v630
    %v632 = vlaneseq
    %v633 = vshrl.u32 %v632, 7
    %v634 = vsub.s32 %v627, %v633
    %v635 = vrot.slane %v623, %v634
    %v636 = vsel %vm143, %v635, %v631
    %vm638 = vcmask 58368
    %639 = vst.msk [vmem:[#allocation6] sm:$0x3] %vm638, %v636
    // Predicated region
    $region34: #{tpu_custom_call.1} parent=1 // pred_check
      _
    $region35: #{tpu_custom_call.1} parent=1 // pred_check_branch
      %641 = sbr.rel (0) target = $region37
    $region36: #{tpu_custom_call.1} parent=1 // pred_region
      %s643 = ssub.s32 32, 32
      %644 = vsyncadd [#allocation5], %s643
      %s646 = sshll.u32 [#allocation6], 4
      %s647 = int_to_ptr.vmem [resolvable:$true] %s646
      %649 = dma.vmem_to_hbm [thread:$0]  %s647, 32, %s7, [#allocation5]
    $region37: #{tpu_custom_call.1} parent=1 // pred_fallthru
      _
    // Predicated region
    $region38: #{tpu_custom_call.1} parent=1 // pred_check
      _
    $region39: #{tpu_custom_call.1} parent=1 // pred_check_branch
      %651 = sbr.rel (0) target = $region41
    $region40: #{tpu_custom_call.1} parent=1 // pred_region
      %s653 = ssub.s32 32, 32
      %654 = vsyncadd [#allocation8], %s653
      %s656 = sshll.u32 [#allocation7], 4
      %s657 = int_to_ptr.vmem [resolvable:$true] %s656
      %659 = dma.vmem_to_hbm [thread:$0]  %s657, 32, %s8, [#allocation8]
    $region41: #{tpu_custom_call.1} parent=1 // pred_fallthru
      _
    // Predicated region
    $region42: #{tpu_custom_call.1} parent=1 // pred_check
      _
    $region43: #{tpu_custom_call.1} parent=1 // pred_check_branch
      %661 = sbr.rel (0) target = $region45
    $region44: #{tpu_custom_call.1} parent=1 // pred_region
      %662 = dma.done [#allocation5], 32
    $region45: #{tpu_custom_call.1} parent=1 // pred_fallthru
      _
    // Predicated region
    $region46: #{tpu_custom_call.1} parent=1 // pred_check
      _
    $region47: #{tpu_custom_call.1} parent=1 // pred_check_branch
      %664 = sbr.rel (0) target = $region49
    $region48: #{tpu_custom_call.1} parent=1 // pred_region
      %665 = dma.done [#allocation8], 32
    $region49: #{tpu_custom_call.1} parent=1 // pred_fallthru
      _
    %666 = vsyncpa [#allocation4], 1
    %667 = vsyncpa [#allocation5], 1
    %668 = vsyncpa [#allocation8], 1

</llo_original>
